<compile_context>
chip_gen: v5e
topology: v5e:2x2
jax: 0.10.0
libtpu: 0.0.40
codegen_flags: <defaults>
</compile_context>

<pallas_src>
import jax
import jax.numpy as jnp
from jax.experimental import pallas as pl
from jax.experimental.pallas import tpu as pltpu


def _round_up(x, m):
    return ((x + m - 1) // m) * m


def _mlp_kernel(x_ref, w1_ref, b1_ref, w2_ref, o_ref):
    # fc1: (TB, n_in) @ (n_in, Hp) -> f32 accumulator; bias add + ReLU in f32
    # on the VPU (v5e has no bf16 VPU path, so elementwise stays f32).
    h = jnp.dot(x_ref[...], w1_ref[...], preferred_element_type=jnp.float32)
    h = jnp.maximum(h + b1_ref[...].astype(jnp.float32), 0.0)
    # fc2: b2 is folded into the last used row of w2 (constant-1 hidden unit).
    # Output is stored compact (TB, n_out); cast matters only for bf16 weights.
    out = jnp.dot(h.astype(w2_ref.dtype), w2_ref[...],
                  preferred_element_type=jnp.float32)
    o_ref[...] = out.astype(o_ref.dtype)


def prepack_lander_params(w1, b1, w2, b2, dtype=None):
    """One-time prepack (call once, reuse across forwards).

    w1: (n_in, H)  = fc1.weight.T      b1: (H,)
    w2: (H, n_out) = fc2.weight.T      b2: (n_out,)

    Returns (w1p, b1p, w2p) where b2 is folded into w2p via an extra hidden
    unit whose pre-activation is exactly 1 (zero input weights, bias 1.0).
    """
    if dtype is None:
        dtype = w1.dtype
    n_in, H = w1.shape
    n_out = w2.shape[1]
    # 8-row sublane multiple for 4-byte dtypes, 16 for bf16 packing.
    mult = 8 if jnp.dtype(dtype).itemsize >= 4 else 16
    Hp = _round_up(H + 1, mult)

    w1p = jnp.zeros((n_in, Hp), dtype).at[:, :H].set(w1.astype(dtype))
    b1p = (jnp.zeros((1, Hp), dtype)
           .at[:, :H].set(jnp.reshape(b1, (1, H)).astype(dtype))
           .at[0, H].set(jnp.asarray(1.0, dtype)))
    w2p = (jnp.zeros((Hp, n_out), dtype)
           .at[:H, :].set(w2.astype(dtype))
           .at[H, :].set(jnp.reshape(b2, (n_out,)).astype(dtype)))
    return w1p, b1p, w2p


def lander_model_forward(x, packed_params, *, block_b=8192):
    """Pallas TPU forward for LanderModel: relu(x @ W1 + b1) @ W2 + b2.

    x: (B, 8);  packed_params = prepack_lander_params(...).
    Returns (B, n_out) in x.dtype.
    """
    w1p, b1p, w2p = packed_params
    B, n_in = x.shape
    Hp = w1p.shape[1]
    n_out = w2p.shape[1]
    dt = x.dtype

    LATENCY_MAX = 2048  # below this, one straight VMEM call beats the pipeline

    if B <= LATENCY_MAX:
        # Latency path: no grid, no software pipeline -- every operand resident
        # in VMEM.  Pad only to a sublane multiple (tiny; skipped when aligned).
        B8 = _round_up(B, 8)
        xin = x if B8 == B else jnp.zeros((B8, n_in), dt).at[:B].set(x)
        vmem = pl.BlockSpec(memory_space=pltpu.MemorySpace.VMEM)
        out = pl.pallas_call(
            _mlp_kernel,
            out_shape=jax.ShapeDtypeStruct((B8, n_out), dt),
            in_specs=[vmem, vmem, vmem, vmem],
            out_specs=vmem,
        )(xin, w1p, b1p, w2p)
        return out if B8 == B else out[:B]

    # Throughput path: tile the batch.  Always >= 2 blocks so v7x's two
    # TensorCores both get work; tiles sized to fit comfortably in 32 MiB
    # scoped VMEM (explicit limit also covers v5e's 16 MiB default).
    nb = max(2, pl.cdiv(B, block_b))
    TB = _round_up(pl.cdiv(B, nb), 8)
    Bp = nb * TB
    # Only ragged batches pay the pad copy; aligned batches pass x through.
    xin = x if Bp == B else jnp.zeros((Bp, n_in), dt).at[:B].set(x)

    itemsize = jnp.dtype(dt).itemsize
    w_itemsize = jnp.dtype(w1p.dtype).itemsize
    cost = pl.CostEstimate(
        flops=2 * Bp * (n_in * Hp + Hp * n_out),
        transcendentals=0,
        bytes_accessed=Bp * (n_in + n_out) * itemsize
        + (w1p.size + b1p.size + w2p.size) * w_itemsize,
    )

    out = pl.pallas_call(
        _mlp_kernel,
        out_shape=jax.ShapeDtypeStruct((Bp, n_out), dt),
        grid=(nb,),
        in_specs=[
            pl.BlockSpec((TB, n_in), lambda i: (i, 0)),
            # Weights/biases use constant block indices: DMA'd once, then
            # VMEM-resident for the whole grid.
            pl.BlockSpec((n_in, Hp), lambda i: (0, 0)),
            pl.BlockSpec((1, Hp), lambda i: (0, 0)),
            pl.BlockSpec((Hp, n_out), lambda i: (0, 0)),
        ],
        out_specs=pl.BlockSpec((TB, n_out), lambda i: (i, 0)),
        compiler_params=pltpu.CompilerParams(
            dimension_semantics=("parallel",),
            vmem_limit_bytes=32 * 1024 * 1024,
        ),
        cost_estimate=cost,
    )(xin, w1p, b1p, w2p)
    return out if Bp == B else out[:B]


def init_params(key, n_hidden, n_inputs=8, n_outputs=4, dtype=jnp.float32):
    """Deterministic init matching nn.Linear shapes (uniform +-1/sqrt(fan_in))."""
    k1, k2, k3, k4 = jax.random.split(key, 4)
    bound1 = 1.0 / jnp.sqrt(n_inputs)
    bound2 = 1.0 / jnp.sqrt(n_hidden)
    # Stored as (in, out): equivalent to PyTorch weight.T
    w1 = jax.random.uniform(k1, (n_inputs, n_hidden), dtype, -bound1, bound1)
    b1 = jax.random.uniform(k2, (n_hidden,), dtype, -bound1, bound1)
    w2 = jax.random.uniform(k3, (n_hidden, n_outputs), dtype, -bound2, bound2)
    b2 = jax.random.uniform(k4, (n_outputs,), dtype, -bound2, bound2)
    return w1, b1, w2, b2


def _reference(x, w1, b1, w2, b2):
    return jnp.maximum(x @ w1 + b1[None, :], 0.0) @ w2 + b2[None, :]


if __name__ == "__main__":
    key = jax.random.PRNGKey(0)
    kx1, kx2, kx3, kx4, kp = jax.random.split(key, 5)

    n_hidden = 32
    n_inputs = 8
    w1, b1, w2, b2 = init_params(kp, n_hidden)
    packed = prepack_lander_params(w1, b1, w2, b2)  # one-time prepack

    # 1) Tiny batch, aligned (latency path, no padding at all).
    x_a = jax.random.normal(kx1, (8, n_inputs), dtype=jnp.float32)
    out_a = jax.block_until_ready(lander_model_forward(x_a, packed))
    assert out_a.shape == (8, 4), out_a.shape
    assert jnp.allclose(out_a, _reference(x_a, w1, b1, w2, b2), atol=1e-4, rtol=1e-4)

    # 2) Small non-multiple batch (latency path, tiny pad + slice).
    x_b = jax.random.normal(kx2, (300, n_inputs), dtype=jnp.float32)
    out_b = jax.block_until_ready(lander_model_forward(x_b, packed))
    assert out_b.shape == (300, 4), out_b.shape
    assert jnp.allclose(out_b, _reference(x_b, w1, b1, w2, b2), atol=1e-4, rtol=1e-4)

    # 3) Larger batch splitting evenly (grid path, 4 parallel blocks, no pad).
    x_c = jax.random.normal(kx3, (4096, n_inputs), dtype=jnp.float32)
    out_c = jax.block_until_ready(lander_model_forward(x_c, packed, block_b=1024))
    assert out_c.shape == (4096, 4), out_c.shape
    assert jnp.allclose(out_c, _reference(x_c, w1, b1, w2, b2), atol=1e-4, rtol=1e-4)

    # 4) Ragged larger batch (grid path, pad + slice fallback).
    x_d = jax.random.normal(kx4, (2500, n_inputs), dtype=jnp.float32)
    out_d = jax.block_until_ready(lander_model_forward(x_d, packed, block_b=1024))
    assert out_d.shape == (2500, 4), out_d.shape
    assert jnp.allclose(out_d, _reference(x_d, w1, b1, w2, b2), atol=1e-4, rtol=1e-4)

    print("KERNEL_OK")
</pallas_src>

<mosaic_0001>
module attributes {stable_mosaic.version = 11 : i64} {
  func.func @_mlp_kernel(%arg0: memref<8x8xf32, #tpu.memory_space<vmem>>, %arg1: memref<8x40xf32, #tpu.memory_space<vmem>>, %arg2: memref<1x40xf32, #tpu.memory_space<vmem>>, %arg3: memref<40x4xf32, #tpu.memory_space<vmem>>, %arg4: memref<8x4xf32, #tpu.memory_space<vmem>>) attributes {dimension_semantics = [], scalar_prefetch = 0 : i64, scratch_operands = 0 : i64, tpu.core_type = #tpu.core_type<tc>} {
    %c0 = arith.constant 0 : index
    %c0_0 = arith.constant 0 : index
    %0 = vector.load %arg0[%c0, %c0_0] : memref<8x8xf32, #tpu.memory_space<vmem>>, vector<8x8xf32>
    %c0_1 = arith.constant 0 : index
    %c0_2 = arith.constant 0 : index
    %1 = vector.load %arg1[%c0_1, %c0_2] : memref<8x40xf32, #tpu.memory_space<vmem>>, vector<8x40xf32>
    %cst = arith.constant dense<0.000000e+00> : vector<8x40xf32>
    %2 = tpu.matmul %0, %1, %cst {dimension_numbers = #tpu.dot_dimension_numbers<[1], [0], [0], [1], [0, 0, 1, 1], [], []>} : vector<8x8xf32>, vector<8x40xf32>, vector<8x40xf32> -> vector<8x40xf32>
    %c0_3 = arith.constant 0 : index
    %c0_4 = arith.constant 0 : index
    %3 = vector.load %arg2[%c0_3, %c0_4] : memref<1x40xf32, #tpu.memory_space<vmem>>, vector<1x40xf32>
    %4 = vector.broadcast %3 : vector<1x40xf32> to vector<8x40xf32>
    %5 = arith.addf %2, %4 : vector<8x40xf32>
    %cst_5 = arith.constant 0.000000e+00 : f32
    %6 = vector.broadcast %cst_5 : f32 to vector<8x40xf32>
    %7 = arith.maximumf %5, %6 : vector<8x40xf32>
    %c0_6 = arith.constant 0 : index
    %c0_7 = arith.constant 0 : index
    %8 = vector.load %arg3[%c0_6, %c0_7] : memref<40x4xf32, #tpu.memory_space<vmem>>, vector<40x4xf32>
    %cst_8 = arith.constant dense<0.000000e+00> : vector<8x4xf32>
    %9 = tpu.matmul %7, %8, %cst_8 {dimension_numbers = #tpu.dot_dimension_numbers<[1], [0], [0], [1], [0, 0, 1, 1], [], []>} : vector<8x40xf32>, vector<40x4xf32>, vector<8x4xf32> -> vector<8x4xf32>
    %c0_9 = arith.constant 0 : index
    %c0_10 = arith.constant 0 : index
    %10 = vector.load %arg4[%c0_9, %c0_10] : memref<8x4xf32, #tpu.memory_space<vmem>>, vector<8x4xf32>
    tpu.vector_store %arg4[%c0_9, %c0_10], %9 {strides = array<i32>} : memref<8x4xf32, #tpu.memory_space<vmem>>, vector<8x4xf32>,
    return
  }
}

</mosaic_0001>

<llo_original>
// kernel: tpu_custom_call.1
$region0: #{tpu_custom_call.1}
  #allocation0 [shape = 'u32[]', space=smem, size = 0x4, offset = 0x4, fixed_abs, tag = 'smem constant byte address 0x4 - core index']
  #allocation1 [shape = 'u32[72,128]{1,0:T(1,128)}', space=vmem, size = 0x9000, scoped, tag = 'internal scratch']
  %s0 = inlined_call_operand.vmem [shape: f32[8,8], index: 0, kind: input, shape index: {}]
  %s1 = inlined_call_operand.vmem [shape: f32[8,40], index: 1, kind: input, shape index: {}]
  %s2 = inlined_call_operand.vmem [shape: f32[1,40], index: 2, kind: input, shape index: {}]
  %s3 = inlined_call_operand.vmem [shape: f32[40,4], index: 3, kind: input, shape index: {}]
  %s4 = inlined_call_operand.vmem [shape: f32[8,4], index: 4, kind: output, shape index: {}]
  %s5 = sld [smem:[#allocation0]]
  $region26: #{tpu_custom_call.1} parent=0
    _
  %s7 = ssub.s32 1, %s5
  %s8 = scalar_select 0, %s7, %s5
  // Predicated region
  $region2: #{tpu_custom_call.1} parent=0 // pred_check
    _
  $region3: #{tpu_custom_call.1} parent=0 // pred_check_branch
    %10 = sbr.rel (0) target = $region5
  $region4: #{tpu_custom_call.1} parent=0 // pred_region
    _
  $region5: #{tpu_custom_call.1} parent=0 // pred_fallthru
    _
  // Predicated region
  $region6: #{tpu_custom_call.1} parent=0 // pred_check
    _
  $region7: #{tpu_custom_call.1} parent=0 // pred_check_branch
    %12 = sbr.rel (0) target = $region9
  $region8: #{tpu_custom_call.1} parent=0 // pred_region
    _
  $region9: #{tpu_custom_call.1} parent=0 // pred_fallthru
    _
  // Predicated region
  $region10: #{tpu_custom_call.1} parent=0 // pred_check
    _
  $region11: #{tpu_custom_call.1} parent=0 // pred_check_branch
    %14 = sbr.rel (0) target = $region13
  $region12: #{tpu_custom_call.1} parent=0 // pred_region
    _
  $region13: #{tpu_custom_call.1} parent=0 // pred_fallthru
    _
  // Predicated region
  $region14: #{tpu_custom_call.1} parent=0 // pred_check
    _
  $region15: #{tpu_custom_call.1} parent=0 // pred_check_branch
    %16 = sbr.rel (0) target = $region17
  $region16: #{tpu_custom_call.1} parent=0 // pred_region
    _
  $region17: #{tpu_custom_call.1} parent=0 // pred_fallthru
    _
  %v17 = vld [vmem:[%s0] sm:$0xff]
  %v18 = vld [vmem:[%s1] sm:$0xff]
  %v19 = vld [vmem:[%s2] sm:$0x1]
  %v21 = vperm.slane %v19, 0
  %vm23 = vcmask 64512
  %v25 = vsel %vm23, %v17, 0
  %27 = vmatpush.msra.mxu0 0.0
  %28 = vmatpush.msra.mxu0 0.0
  %29 = vmatpush.msra.mxu0 0.0
  %30 = vmatpush.msra.mxu0 0.0
  %31 = vmatpush.msra.mxu0 0.0
  %32 = vmatpush.msra.mxu0 0.0
  %33 = vmatpush.msra.mxu0 0.0
  %34 = vmatpush.msra.mxu0 0.0
  %35 = vmatpush.msra.mxu0 0.0
  %36 = vmatpush.msra.mxu0 0.0
  %37 = vmatpush.msra.mxu0 0.0
  %38 = vmatpush.msra.mxu0 0.0
  %39 = vmatpush.msra.mxu0 0.0
  %40 = vmatpush.msra.mxu0 0.0
  %41 = vmatpush.msra.mxu0 0.0
  %42 = vmatpush.msra.mxu0 %v18
  %43 = vmatmul.f32.gmra.mxu0 %v25
  %v44 = vpop.f32.mrf.mxu0
  %v45 = vadd.f32 %v21, %v44
  %46 = vdwg.mxu0
  %v47 = vmax.f32 %v45, 0.0
  %v48 = vld [vmem:[%s3] sm:$0xff]
  %v49 = vld [vmem:[%s3 + $0x8] sm:$0xff]
  %v50 = vld [vmem:[%s3 + $0x10] sm:$0xff]
  %v51 = vld [vmem:[%s3 + $0x18] sm:$0xff]
  %v52 = vld [vmem:[%s3 + $0x20] sm:$0xff]
  %vm53 = vcmask 326656
  %v55 = vsel %vm53, %v47, 0
  %57 = vmatpush.msra.mxu0 0.0
  %58 = vmatpush.msra.mxu0 0.0
  %59 = vmatpush.msra.mxu0 0.0
  %60 = vmatpush.msra.mxu0 0.0
  %61 = vmatpush.msra.mxu0 0.0
  %62 = vmatpush.msra.mxu0 0.0
  %63 = vmatpush.msra.mxu0 0.0
  %64 = vmatpush.msra.mxu0 0.0
  %65 = vmatpush.msra.mxu0 0.0
  %66 = vmatpush.msra.mxu0 0.0
  %67 = vmatpush.msra.mxu0 0.0
  %68 = vmatpush.msra.mxu0 %v52
  %69 = vmatpush.msra.mxu0 %v51
  %70 = vmatpush.msra.mxu0 %v50
  %71 = vmatpush.msra.mxu0 %v49
  %72 = vmatpush.msra.mxu0 %v48
  %73 = vmatmul.f32.gmra.mxu0 %v55
  %v74 = vpop.f32.mrf.mxu0
  %v75 = vadd.f32 0.0, %v74
  %76 = vdwg.mxu0
  %vm77 = vcmask 31744
  %78 = vst.msk [vmem:[%s4] sm:$0xff] %vm77, %v75
  // Predicated region
  $region18: #{tpu_custom_call.1} parent=0 // pred_check
    _
  $region19: #{tpu_custom_call.1} parent=0 // pred_check_branch
    %80 = sbr.rel (0) target = $region21
  $region20: #{tpu_custom_call.1} parent=0 // pred_region
    _
  $region21: #{tpu_custom_call.1} parent=0 // pred_fallthru
    _
  // Predicated region
  $region22: #{tpu_custom_call.1} parent=0 // pred_check
    _
  $region23: #{tpu_custom_call.1} parent=0 // pred_check_branch
    %82 = sbr.rel (0) target = $region25
  $region24: #{tpu_custom_call.1} parent=0 // pred_region
    _
  $region25: #{tpu_custom_call.1} parent=0 // pred_fallthru
    _

</llo_original>
